<compile_context>
chip_gen: v5e
topology: v5e:2x2
jax: 0.10.0
libtpu: 0.0.40
codegen_flags: <defaults>
</compile_context>

<pallas_src>
import functools

import jax
import jax.numpy as jnp
from jax.experimental import pallas as pl
from jax.experimental.pallas import tpu as pltpu

LANE = 128


def _round_up(n, m):
    return ((n + m - 1) // m) * m


def mlp_kernel(x_ref, w1_ref, b1_ref, w2_ref, b2_ref, w3_ref, b3_ref, o_ref):
    # Layer 1: Linear(input_dim -> 50) + ReLU.  bf16 MXU operands, f32 acc.
    x_bf = x_ref[...].astype(jnp.bfloat16)
    h1 = jnp.dot(x_bf, w1_ref[...], preferred_element_type=jnp.float32)
    h1 = jnp.maximum(h1 + b1_ref[...], 0.0)

    # Layer 2: Linear(50 -> 50) + ReLU.
    h2 = jnp.dot(h1.astype(jnp.bfloat16), w2_ref[...],
                 preferred_element_type=jnp.float32)
    h2 = jnp.maximum(h2 + b2_ref[...], 0.0)

    # Layer 3: Linear(50 -> 3), zero-padded to 128 lanes so the store is
    # lane-dense (full vst instead of masked partial stores).
    out = jnp.dot(h2.astype(jnp.bfloat16), w3_ref[...],
                  preferred_element_type=jnp.float32) + b3_ref[...]
    o_ref[...] = out.astype(o_ref.dtype)


def mlp_forward(x, w1, b1, w2, b2, w3, b3, *, block_b=None):
    B, D = x.shape
    H1 = w1.shape[1]
    H2 = w2.shape[1]
    O = w3.shape[1]
    O_pad = _round_up(O, LANE)

    if block_b is None:
        if B <= 16:
            # Tiny batch: one tile covering the whole batch (block == full dim
            # is always a legal BlockSpec shape).
            block_b = B
        else:
            # Large tiles amortize per-step pipeline overhead; cap at 2048
            # (still only ~5 MiB of double-buffered VMEM at D=32) and keep
            # >= 2 grid steps so v7x megacore sharding has work per core.
            block_b = max(8, min(2048, _round_up(pl.cdiv(B, 2), 8)))

    # bf16 weights for the MXU; biases stay f32 (VPU add + ReLU in f32).
    w1b = w1.astype(jnp.bfloat16)
    w2b = w2.astype(jnp.bfloat16)
    # Zero-pad the last layer to a lane-dense (128-wide) output.
    w3p = jnp.zeros((H2, O_pad), jnp.bfloat16).at[:, :O].set(w3.astype(jnp.bfloat16))
    b3p = jnp.zeros((1, O_pad), jnp.float32).at[:, :O].set(b3.astype(jnp.float32))
    b1f = b1.astype(jnp.float32)
    b2f = b2.astype(jnp.float32)

    grid = (pl.cdiv(B, block_b),)
    out_padded = pl.pallas_call(
        mlp_kernel,
        out_shape=jax.ShapeDtypeStruct((B, O_pad), x.dtype),
        grid_spec=pltpu.PrefetchScalarGridSpec(
            num_scalar_prefetch=0,
            grid=grid,
            in_specs=[
                pl.BlockSpec((block_b, D), lambda i: (i, 0)),   # x tile (streamed)
                pl.BlockSpec((D, H1), lambda i: (0, 0)),        # w1 (VMEM-resident)
                pl.BlockSpec((1, H1), lambda i: (0, 0)),        # b1
                pl.BlockSpec((H1, H2), lambda i: (0, 0)),       # w2
                pl.BlockSpec((1, H2), lambda i: (0, 0)),        # b2
                pl.BlockSpec((H2, O_pad), lambda i: (0, 0)),    # w3 (lane-padded)
                pl.BlockSpec((1, O_pad), lambda i: (0, 0)),     # b3 (lane-padded)
            ],
            out_specs=pl.BlockSpec((block_b, O_pad), lambda i: (i, 0)),
        ),
        compiler_params=pltpu.CompilerParams(
            dimension_semantics=("parallel",)),
    )(x, w1b, b1f, w2b, b2f, w3p, b3p)
    # Slice back to the true 3-wide output (fuses into the surrounding graph
    # under jit).
    return out_padded[:, :O]


def init_params(key, input_dim, h1=50, h2=50, out=3, dtype=jnp.float32):
    # Deterministic PyTorch-style uniform(-1/sqrt(fan_in), 1/sqrt(fan_in)) init.
    ks = jax.random.split(key, 6)

    def lin(kw, kb, fan_in, fan_out):
        bound = 1.0 / jnp.sqrt(float(fan_in))
        w = jax.random.uniform(kw, (fan_in, fan_out), dtype, -bound, bound)
        b = jax.random.uniform(kb, (1, fan_out), dtype, -bound, bound)
        return w, b

    w1, b1 = lin(ks[0], ks[1], input_dim, h1)
    w2, b2 = lin(ks[2], ks[3], h1, h2)
    w3, b3 = lin(ks[4], ks[5], h2, out)
    return w1, b1, w2, b2, w3, b3


def _ref_forward_bf16(x, w1, b1, w2, b2, w3, b3):
    # Pure-JAX reference with the same bf16-operand / f32-accum numerics.
    bf = jnp.bfloat16
    h1 = jnp.maximum(
        jnp.dot(x.astype(bf), w1.astype(bf), preferred_element_type=jnp.float32) + b1, 0.0)
    h2 = jnp.maximum(
        jnp.dot(h1.astype(bf), w2.astype(bf), preferred_element_type=jnp.float32) + b2, 0.0)
    return jnp.dot(h2.astype(bf), w3.astype(bf),
                   preferred_element_type=jnp.float32) + b3


if __name__ == "__main__":
    key = jax.random.PRNGKey(0)
    k_x, k_p = jax.random.split(key)

    B, INPUT_DIM = 64, 32
    x = jax.random.normal(k_x, (B, INPUT_DIM), jnp.float32)
    params = init_params(k_p, INPUT_DIM)

    # Jit the wrapper so the weight cast / pad and the final [:, :3] slice fuse
    # with the pallas_call instead of running as separate dispatches.
    fwd = jax.jit(functools.partial(mlp_forward))
    out = fwd(x, *params)
    out = jax.block_until_ready(out)

    w1, b1, w2, b2, w3, b3 = params
    ref_bf16 = _ref_forward_bf16(x, w1, b1, w2, b2, w3, b3)
    ref_f32 = jnp.maximum(x @ w1 + b1, 0.0)
    ref_f32 = jnp.maximum(ref_f32 @ w2 + b2, 0.0)
    ref_f32 = ref_f32 @ w3 + b3

    assert out.shape == (B, 3)
    # Tight check against a reference with the same bf16 MXU numerics.
    assert jnp.allclose(out, ref_bf16, atol=2e-3, rtol=2e-3)
    # Coarse sanity check against the pure-f32 math of the original module.
    assert jnp.allclose(out, ref_f32, atol=5e-2, rtol=0.0)

    print("KERNEL_OK")
</pallas_src>

<mosaic_0001>
module attributes {stable_mosaic.version = 11 : i64} {
  func.func @mlp_kernel(%arg0: i32, %arg1: memref<32x32xf32, #tpu.memory_space<vmem>>, %arg2: memref<32x50xbf16, #tpu.memory_space<vmem>>, %arg3: memref<1x50xf32, #tpu.memory_space<vmem>>, %arg4: memref<50x50xbf16, #tpu.memory_space<vmem>>, %arg5: memref<1x50xf32, #tpu.memory_space<vmem>>, %arg6: memref<50x128xbf16, #tpu.memory_space<vmem>>, %arg7: memref<1x128xf32, #tpu.memory_space<vmem>>, %arg8: memref<32x128xf32, #tpu.memory_space<vmem>>) attributes {dimension_semantics = [#tpu.dimension_semantics<parallel>], iteration_bounds = array<i64: 2>, scalar_prefetch = 0 : i64, scratch_operands = 0 : i64, tpu.core_type = #tpu.core_type<tc>, window_params = [{transform_indices = @transform_0, window_bounds = array<i64: 32, 32>}, {pipeline_mode = #tpu.pipeline_mode<synchronous>, transform_indices = @transform_1, window_bounds = array<i64: 32, 50>}, {pipeline_mode = #tpu.pipeline_mode<synchronous>, transform_indices = @transform_2, window_bounds = array<i64: 1, 50>}, {pipeline_mode = #tpu.pipeline_mode<synchronous>, transform_indices = @transform_3, window_bounds = array<i64: 50, 50>}, {pipeline_mode = #tpu.pipeline_mode<synchronous>, transform_indices = @transform_4, window_bounds = array<i64: 1, 50>}, {pipeline_mode = #tpu.pipeline_mode<synchronous>, transform_indices = @transform_5, window_bounds = array<i64: 50, 128>}, {pipeline_mode = #tpu.pipeline_mode<synchronous>, transform_indices = @transform_6, window_bounds = array<i64: 1, 128>}, {transform_indices = @transform_7, window_bounds = array<i64: 32, 128>}]} {
    %c0 = arith.constant 0 : index
    %c0_0 = arith.constant 0 : index
    %0 = vector.load %arg1[%c0, %c0_0] : memref<32x32xf32, #tpu.memory_space<vmem>>, vector<32x32xf32>
    %1 = arith.truncf %0 : vector<32x32xf32> to vector<32x32xbf16>
    %c0_1 = arith.constant 0 : index
    %c0_2 = arith.constant 0 : index
    %2 = vector.load %arg2[%c0_1, %c0_2] : memref<32x50xbf16, #tpu.memory_space<vmem>>, vector<32x50xbf16>
    %cst = arith.constant dense<0.000000e+00> : vector<32x50xf32>
    %3 = tpu.matmul %1, %2, %cst {dimension_numbers = #tpu.dot_dimension_numbers<[1], [0], [0], [1], [0, 0, 1, 1], [], []>} : vector<32x32xbf16>, vector<32x50xbf16>, vector<32x50xf32> -> vector<32x50xf32>
    %c0_3 = arith.constant 0 : index
    %c0_4 = arith.constant 0 : index
    %4 = vector.load %arg3[%c0_3, %c0_4] : memref<1x50xf32, #tpu.memory_space<vmem>>, vector<1x50xf32>
    %5 = vector.broadcast %4 : vector<1x50xf32> to vector<32x50xf32>
    %6 = arith.addf %3, %5 : vector<32x50xf32>
    %cst_5 = arith.constant 0.000000e+00 : f32
    %7 = vector.broadcast %cst_5 : f32 to vector<32x50xf32>
    %8 = arith.maximumf %6, %7 : vector<32x50xf32>
    %9 = arith.truncf %8 : vector<32x50xf32> to vector<32x50xbf16>
    %c0_6 = arith.constant 0 : index
    %c0_7 = arith.constant 0 : index
    %10 = vector.load %arg4[%c0_6, %c0_7] : memref<50x50xbf16, #tpu.memory_space<vmem>>, vector<50x50xbf16>
    %cst_8 = arith.constant dense<0.000000e+00> : vector<32x50xf32>
    %11 = tpu.matmul %9, %10, %cst_8 {dimension_numbers = #tpu.dot_dimension_numbers<[1], [0], [0], [1], [0, 0, 1, 1], [], []>} : vector<32x50xbf16>, vector<50x50xbf16>, vector<32x50xf32> -> vector<32x50xf32>
    %c0_9 = arith.constant 0 : index
    %c0_10 = arith.constant 0 : index
    %12 = vector.load %arg5[%c0_9, %c0_10] : memref<1x50xf32, #tpu.memory_space<vmem>>, vector<1x50xf32>
    %13 = vector.broadcast %12 : vector<1x50xf32> to vector<32x50xf32>
    %14 = arith.addf %11, %13 : vector<32x50xf32>
    %cst_11 = arith.constant 0.000000e+00 : f32
    %15 = vector.broadcast %cst_11 : f32 to vector<32x50xf32>
    %16 = arith.maximumf %14, %15 : vector<32x50xf32>
    %17 = arith.truncf %16 : vector<32x50xf32> to vector<32x50xbf16>
    %c0_12 = arith.constant 0 : index
    %c0_13 = arith.constant 0 : index
    %18 = vector.load %arg6[%c0_12, %c0_13] : memref<50x128xbf16, #tpu.memory_space<vmem>>, vector<50x128xbf16>
    %cst_14 = arith.constant dense<0.000000e+00> : vector<32x128xf32>
    %19 = tpu.matmul %17, %18, %cst_14 {dimension_numbers = #tpu.dot_dimension_numbers<[1], [0], [0], [1], [0, 0, 1, 1], [], []>} : vector<32x50xbf16>, vector<50x128xbf16>, vector<32x128xf32> -> vector<32x128xf32>
    %c0_15 = arith.constant 0 : index
    %c0_16 = arith.constant 0 : index
    %20 = vector.load %arg7[%c0_15, %c0_16] : memref<1x128xf32, #tpu.memory_space<vmem>>, vector<1x128xf32>
    %21 = vector.broadcast %20 : vector<1x128xf32> to vector<32x128xf32>
    %22 = arith.addf %19, %21 : vector<32x128xf32>
    %c0_17 = arith.constant 0 : index
    %c0_18 = arith.constant 0 : index
    %23 = vector.load %arg8[%c0_17, %c0_18] : memref<32x128xf32, #tpu.memory_space<vmem>>, vector<32x128xf32>
    tpu.vector_store %arg8[%c0_17, %c0_18], %22 {strides = array<i32>} : memref<32x128xf32, #tpu.memory_space<vmem>>, vector<32x128xf32>,
    return
  }
  func.func @transform_0(%arg0: i32) -> (i32, i32) {
    %c0_i32 = arith.constant 0 : i32
    %c0_i32_0 = arith.constant 0 : i32
    return %arg0, %c0_i32 : i32, i32
  }
  func.func @transform_1(%arg0: i32) -> (i32, i32) {
    %c0_i32 = arith.constant 0 : i32
    %c0_i32_0 = arith.constant 0 : i32
    %c0_i32_1 = arith.constant 0 : i32
    return %c0_i32, %c0_i32_0 : i32, i32
  }
  func.func @transform_2(%arg0: i32) -> (i32, i32) {
    %c0_i32 = arith.constant 0 : i32
    %c0_i32_0 = arith.constant 0 : i32
    %c0_i32_1 = arith.constant 0 : i32
    return %c0_i32, %c0_i32_0 : i32, i32
  }
  func.func @transform_3(%arg0: i32) -> (i32, i32) {
    %c0_i32 = arith.constant 0 : i32
    %c0_i32_0 = arith.constant 0 : i32
    %c0_i32_1 = arith.constant 0 : i32
    return %c0_i32, %c0_i32_0 : i32, i32
  }
  func.func @transform_4(%arg0: i32) -> (i32, i32) {
    %c0_i32 = arith.constant 0 : i32
    %c0_i32_0 = arith.constant 0 : i32
    %c0_i32_1 = arith.constant 0 : i32
    return %c0_i32, %c0_i32_0 : i32, i32
  }
  func.func @transform_5(%arg0: i32) -> (i32, i32) {
    %c0_i32 = arith.constant 0 : i32
    %c0_i32_0 = arith.constant 0 : i32
    %c0_i32_1 = arith.constant 0 : i32
    return %c0_i32, %c0_i32_0 : i32, i32
  }
  func.func @transform_6(%arg0: i32) -> (i32, i32) {
    %c0_i32 = arith.constant 0 : i32
    %c0_i32_0 = arith.constant 0 : i32
    %c0_i32_1 = arith.constant 0 : i32
    return %c0_i32, %c0_i32_0 : i32, i32
  }
  func.func @transform_7(%arg0: i32) -> (i32, i32) {
    %c0_i32 = arith.constant 0 : i32
    %c0_i32_0 = arith.constant 0 : i32
    return %arg0, %c0_i32 : i32, i32
  }
}

</mosaic_0001>

<llo_original>
// kernel: mlp_forward.1
$region0: #{mlp_forward.1}
  #allocation0 [shape = 'u32[]', space=smem, size = 0x4, offset = 0x4, fixed_abs, tag = 'smem constant byte address 0x4 - core index']
  #allocation1 [shape = 'u32[72,128]{1,0:T(1,128)}', space=vmem, size = 0x9000, scoped, tag = 'internal scratch']
  %s0 = inlined_call_operand.vmem [shape: f32[64,32], index: 0, kind: input, shape index: {}]
  %s1 = inlined_call_operand.vmem [shape: bf16[32,50], index: 1, kind: input, shape index: {}]
  %s2 = inlined_call_operand.vmem [shape: f32[1,50], index: 2, kind: input, shape index: {}]
  %s3 = inlined_call_operand.vmem [shape: bf16[50,50], index: 3, kind: input, shape index: {}]
  %s4 = inlined_call_operand.vmem [shape: f32[1,50], index: 4, kind: input, shape index: {}]
  %s5 = inlined_call_operand.vmem [shape: bf16[50,128], index: 5, kind: input, shape index: {}]
  %s6 = inlined_call_operand.vmem [shape: f32[1,128], index: 6, kind: input, shape index: {}]
  %s7 = inlined_call_operand.vmem [shape: f32[64,128], index: 7, kind: output, shape index: {}]
  %s8 = sld [smem:[#allocation0]]
  $region61: #{mlp_forward.1} parent=0
    _
  %s10 = ssub.s32 1, %s8
  %s11 = scalar_select 0, %s10, %s8
  loop: start=0, step=1, limit=4
  $region2: #{mlp_forward.1} parent=0 // loop_pre_header
    _
  $region3: #{mlp_forward.1} parent=0 // loop_header
    %s13 = sphi 0, %s17
    %p14 = scmp.ge.s32.totalorder %s13, 4
    %s23 = sphi 0, %s25
    %s26 = sphi 0, %s23
    %s27 = sphi 0, %s26
    %s43 = sphi 0, %s27
    %s47 = sphi 0, %s47
    %s49 = sphi 0, %s47
    %s50 = sphi 0, %s49
    %s64 = sphi 0, %s50
    %s68 = sphi 0, %s68
    %s70 = sphi 0, %s68
    %s71 = sphi 0, %s70
    %s85 = sphi 0, %s71
    %s89 = sphi 0, %s89
    %s91 = sphi 0, %s89
    %s92 = sphi 0, %s91
    %s106 = sphi 0, %s92
    %s110 = sphi 0, %s110
    %s112 = sphi 0, %s110
    %s113 = sphi 0, %s112
    %s127 = sphi 0, %s113
    %s131 = sphi 0, %s131
    %s133 = sphi 0, %s131
    %s134 = sphi 0, %s133
    %s148 = sphi 0, %s134
    %s152 = sphi 0, %s152
    %s154 = sphi 0, %s152
    %s155 = sphi 0, %s154
    %s169 = sphi 0, %s155
    %s175 = sphi 0, %s177
    %s178 = sphi 0, %s175
    %s179 = sphi 0, %s178
    %s195 = sphi 0, %s179
  $region4: #{mlp_forward.1} parent=0 // loop_header_branch
    %16 = sbr.rel (%p14) target = $region8
  $region5: #{mlp_forward.1} parent=0 // loop_body
    %s18 = ssub.s32 %s13, 1
    %s19 = ssub.s32 %s13, 2
    %s20 = sadd.s32 %s13, 1
    %s21 = ssub.s32 %s13, %s20
    %p22 = scmp.eq.s32.totalorder %s21, 0
    %s24 = sadd.s32 %s23, 1
    %s25 = scalar_select %p22, %s23, %s24
    %p28 = pneg %p22
    %p29 = scmp.eq.s32.totalorder %s13, 1
    %p30 = por %p28, %p29
    %p31 = scmp.ne.s32.totalorder %s23, %s26
    %p32 = scmp.eq.s32.totalorder %s13, 0
    %p33 = por %p31, %p32
    %p34 = scmp.ne.s32.totalorder %s23, %s26
    %p35 = scmp.eq.s32.totalorder %s18, 1
    %p36 = por %p34, %p35
    %p37 = scmp.ne.s32.totalorder %s26, %s27
    %p38 = scmp.eq.s32.totalorder %s18, 0
    %p39 = por %p37, %p38
    %p40 = scmp.ne.s32.totalorder %s26, %s27
    %p41 = scmp.eq.s32.totalorder %s19, 1
    %p42 = por %p40, %p41
    %p44 = scmp.ne.s32.totalorder %s27, %s43
    %p45 = scmp.eq.s32.totalorder %s19, 0
    %p46 = por %p44, %p45
    %s48 = sadd.s32 %s47, 1
    %p51 = scmp.eq.s32.totalorder %s13, 1
    %p52 = scmp.ne.s32.totalorder %s47, %s49
    %p53 = scmp.eq.s32.totalorder %s13, 0
    %p54 = por %p52, %p53
    %p55 = scmp.ne.s32.totalorder %s47, %s49
    %p56 = scmp.eq.s32.totalorder %s18, 1
    %p57 = por %p55, %p56
    %p58 = scmp.ne.s32.totalorder %s49, %s50
    %p59 = scmp.eq.s32.totalorder %s18, 0
    %p60 = por %p58, %p59
    %p61 = scmp.ne.s32.totalorder %s49, %s50
    %p62 = scmp.eq.s32.totalorder %s19, 1
    %p63 = por %p61, %p62
    %p65 = scmp.ne.s32.totalorder %s50, %s64
    %p66 = scmp.eq.s32.totalorder %s19, 0
    %p67 = por %p65, %p66
    %s69 = sadd.s32 %s68, 1
    %p72 = scmp.eq.s32.totalorder %s13, 1
    %p73 = scmp.ne.s32.totalorder %s68, %s70
    %p74 = scmp.eq.s32.totalorder %s13, 0
    %p75 = por %p73, %p74
    %p76 = scmp.ne.s32.totalorder %s68, %s70
    %p77 = scmp.eq.s32.totalorder %s18, 1
    %p78 = por %p76, %p77
    %p79 = scmp.ne.s32.totalorder %s70, %s71
    %p80 = scmp.eq.s32.totalorder %s18, 0
    %p81 = por %p79, %p80
    %p82 = scmp.ne.s32.totalorder %s70, %s71
    %p83 = scmp.eq.s32.totalorder %s19, 1
    %p84 = por %p82, %p83
    %p86 = scmp.ne.s32.totalorder %s71, %s85
    %p87 = scmp.eq.s32.totalorder %s19, 0
    %p88 = por %p86, %p87
    %s90 = sadd.s32 %s89, 1
    %p93 = scmp.eq.s32.totalorder %s13, 1
    %p94 = scmp.ne.s32.totalorder %s89, %s91
    %p95 = scmp.eq.s32.totalorder %s13, 0
    %p96 = por %p94, %p95
    %p97 = scmp.ne.s32.totalorder %s89, %s91
    %p98 = scmp.eq.s32.totalorder %s18, 1
    %p99 = por %p97, %p98
    %p100 = scmp.ne.s32.totalorder %s91, %s92
    %p101 = scmp.eq.s32.totalorder %s18, 0
    %p102 = por %p100, %p101
    %p103 = scmp.ne.s32.totalorder %s91, %s92
    %p104 = scmp.eq.s32.totalorder %s19, 1
    %p105 = por %p103, %p104
    %p107 = scmp.ne.s32.totalorder %s92, %s106
    %p108 = scmp.eq.s32.totalorder %s19, 0
    %p109 = por %p107, %p108
    %s111 = sadd.s32 %s110, 1
    %p114 = scmp.eq.s32.totalorder %s13, 1
    %p115 = scmp.ne.s32.totalorder %s110, %s112
    %p116 = scmp.eq.s32.totalorder %s13, 0
    %p117 = por %p115, %p116
    %p118 = scmp.ne.s32.totalorder %s110, %s112
    %p119 = scmp.eq.s32.totalorder %s18, 1
    %p120 = por %p118, %p119
    %p121 = scmp.ne.s32.totalorder %s112, %s113
    %p122 = scmp.eq.s32.totalorder %s18, 0
    %p123 = por %p121, %p122
    %p124 = scmp.ne.s32.totalorder %s112, %s113
    %p125 = scmp.eq.s32.totalorder %s19, 1
    %p126 = por %p124, %p125
    %p128 = scmp.ne.s32.totalorder %s113, %s127
    %p129 = scmp.eq.s32.totalorder %s19, 0
    %p130 = por %p128, %p129
    %s132 = sadd.s32 %s131, 1
    %p135 = scmp.eq.s32.totalorder %s13, 1
    %p136 = scmp.ne.s32.totalorder %s131, %s133
    %p137 = scmp.eq.s32.totalorder %s13, 0
    %p138 = por %p136, %p137
    %p139 = scmp.ne.s32.totalorder %s131, %s133
    %p140 = scmp.eq.s32.totalorder %s18, 1
    %p141 = por %p139, %p140
    %p142 = scmp.ne.s32.totalorder %s133, %s134
    %p143 = scmp.eq.s32.totalorder %s18, 0
    %p144 = por %p142, %p143
    %p145 = scmp.ne.s32.totalorder %s133, %s134
    %p146 = scmp.eq.s32.totalorder %s19, 1
    %p147 = por %p145, %p146
    %p149 = scmp.ne.s32.totalorder %s134, %s148
    %p150 = scmp.eq.s32.totalorder %s19, 0
    %p151 = por %p149, %p150
    %s153 = sadd.s32 %s152, 1
    %p156 = scmp.eq.s32.totalorder %s13, 1
    %p157 = scmp.ne.s32.totalorder %s152, %s154
    %p158 = scmp.eq.s32.totalorder %s13, 0
    %p159 = por %p157, %p158
    %p160 = scmp.ne.s32.totalorder %s152, %s154
    %p161 = scmp.eq.s32.totalorder %s18, 1
    %p162 = por %p160, %p161
    %p163 = scmp.ne.s32.totalorder %s154, %s155
    %p164 = scmp.eq.s32.totalorder %s18, 0
    %p165 = por %p163, %p164
    %p166 = scmp.ne.s32.totalorder %s154, %s155
    %p167 = scmp.eq.s32.totalorder %s19, 1
    %p168 = por %p166, %p167
    %p170 = scmp.ne.s32.totalorder %s155, %s169
    %p171 = scmp.eq.s32.totalorder %s19, 0
    %p172 = por %p170, %p171
    %s173 = ssub.s32 %s13, %s20
    %p174 = scmp.eq.s32.totalorder %s173, 0
    %s176 = sadd.s32 %s175, 1
    %s177 = scalar_select %p174, %s175, %s176
    %p180 = pneg %p174
    %p181 = scmp.eq.s32.totalorder %s13, 1
    %p182 = por %p180, %p181
    %p183 = scmp.ne.s32.totalorder %s175, %s178
    %p184 = scmp.eq.s32.totalorder %s13, 0
    %p185 = por %p183, %p184
    %p186 = scmp.ne.s32.totalorder %s175, %s178
    %p187 = scmp.eq.s32.totalorder %s18, 1
    %p188 = por %p186, %p187
    %p189 = scmp.ne.s32.totalorder %s178, %s179
    %p190 = scmp.eq.s32.totalorder %s18, 0
    %p191 = por %p189, %p190
    %p192 = scmp.ne.s32.totalorder %s178, %s179
    %p193 = scmp.eq.s32.totalorder %s19, 1
    %p194 = por %p192, %p193
    %p196 = scmp.ne.s32.totalorder %s179, %s195
    %p197 = scmp.eq.s32.totalorder %s19, 0
    %p198 = por %p196, %p197
    %p199 = scmp.le.s32.totalorder 1, %s13
    %p200 = scmp.lt.s32.totalorder %s13, 3
    %p201 = pnand %p199, %p200
    %p202 = pneg %p201
    // Predicated region
    $region9: #{mlp_forward.1} parent=5 // pred_check
      _
    $region10: #{mlp_forward.1} parent=5 // pred_check_branch
      %204 = sbr.rel (%p201) target = $region12
    $region11: #{mlp_forward.1} parent=5 // pred_region
      %s205 = ssub.s32 %s13, 1
      // Predicated region
      $region13: #{mlp_forward.1} parent=11 // pred_check
        %p206 = pneg %p60
      $region14: #{mlp_forward.1} parent=11 // pred_check_branch
        %208 = sbr.rel (%p206) target = $region16
      $region15: #{mlp_forward.1} parent=11 // pred_region
        _
      $region16: #{mlp_forward.1} parent=11 // pred_fallthru
        _
      // Predicated region
      $region17: #{mlp_forward.1} parent=11 // pred_check
        %p209 = pneg %p81
      $region18: #{mlp_forward.1} parent=11 // pred_check_branch
        %211 = sbr.rel (%p209) target = $region20
      $region19: #{mlp_forward.1} parent=11 // pred_region
        _
      $region20: #{mlp_forward.1} parent=11 // pred_fallthru
        _
      // Predicated region
      $region21: #{mlp_forward.1} parent=11 // pred_check
        %p212 = pneg %p102
      $region22: #{mlp_forward.1} parent=11 // pred_check_branch
        %214 = sbr.rel (%p212) target = $region24
      $region23: #{mlp_forward.1} parent=11 // pred_region
        _
      $region24: #{mlp_forward.1} parent=11 // pred_fallthru
        _
      // Predicated region
      $region25: #{mlp_forward.1} parent=11 // pred_check
        %p215 = pneg %p123
      $region26: #{mlp_forward.1} parent=11 // pred_check_branch
        %217 = sbr.rel (%p215) target = $region28
      $region27: #{mlp_forward.1} parent=11 // pred_region
        _
      $region28: #{mlp_forward.1} parent=11 // pred_fallthru
        _
      // Predicated region
      $region29: #{mlp_forward.1} parent=11 // pred_check
        %p218 = pneg %p144
      $region30: #{mlp_forward.1} parent=11 // pred_check_branch
        %220 = sbr.rel (%p218) target = $region32
      $region31: #{mlp_forward.1} parent=11 // pred_region
        _
      $region32: #{mlp_forward.1} parent=11 // pred_fallthru
        _
      // Predicated region
      $region33: #{mlp_forward.1} parent=11 // pred_check
        %p221 = pneg %p165
      $region34: #{mlp_forward.1} parent=11 // pred_check_branch
        %223 = sbr.rel (%p221) target = $region36
      $region35: #{mlp_forward.1} parent=11 // pred_region
        _
      $region36: #{mlp_forward.1} parent=11 // pred_fallthru
        _
    $region12: #{mlp_forward.1} parent=5 // pred_fallthru
      _
    %p224 = scmp.lt.s32.totalorder %s13, 2
    // Predicated region
    $region37: #{mlp_forward.1} parent=5 // pred_check
      %p225 = pneg %p224
    $region38: #{mlp_forward.1} parent=5 // pred_check_branch
      %227 = sbr.rel (%p225) target = $region40
    $region39: #{mlp_forward.1} parent=5 // pred_region
      // Predicated region
      $region41: #{mlp_forward.1} parent=39 // pred_check
        %p228 = pneg %p33
      $region42: #{mlp_forward.1} parent=39 // pred_check_branch
        %230 = sbr.rel (%p228) target = $region44
      $region43: #{mlp_forward.1} parent=39 // pred_region
        %s231 = smul.u32 4, %s13
        %p232 = scmp.lt.s32.totalorder %s231, 7
        %s233 = scalar_select %p232, %s231, 7
        %s234 = smul.addr %s233, 8
        %s235 = scalar_lea.vmem %s0, %s234
        %s236 = smul.u32 4, %s13
      $region44: #{mlp_forward.1} parent=39 // pred_fallthru
        _
    $region40: #{mlp_forward.1} parent=5 // pred_fallthru
      _
    %p237 = scmp.le.s32.totalorder 1, %s13
    %p238 = scmp.lt.s32.totalorder %s13, 3
    %p239 = pnand %p237, %p238
    %p240 = pneg %p239
    // Predicated region
    $region45: #{mlp_forward.1} parent=5 // pred_check
      _
    $region46: #{mlp_forward.1} parent=5 // pred_check_branch
      %242 = sbr.rel (%p239) target = $region48
    $region47: #{mlp_forward.1} parent=5 // pred_region
      %s243 = ssub.s32 %s13, 1
      %s244 = smul.u32 4, %s18
      %p245 = scmp.lt.s32.totalorder %s244, 7
      %s246 = scalar_select %p245, %s244, 7
      %s247 = smul.addr %s246, 8
      %s248 = scalar_lea.vmem %s0, %s247
      %p249 = pneg %p39
      %p250 = pneg %p36
      %p251 = pneg %p60
      %p252 = pneg %p57
      %p253 = pneg %p81
      %p254 = pneg %p78
      %p255 = pneg %p102
      %p256 = pneg %p99
      %p257 = pneg %p123
      %p258 = pneg %p120
      %p259 = pneg %p144
      %p260 = pneg %p141
      %p261 = pneg %p165
      %p262 = pneg %p162
      %p263 = pneg %p191
      %p264 = pneg %p188
      %s265 = smul.u32 4, %s18
      %p266 = scmp.lt.s32.totalorder %s265, 7
      %s267 = scalar_select %p266, %s265, 7
      %s268 = smul.addr %s267, 8
      %s269 = scalar_lea.vmem %s7, %s268
      %s270 = smul.u32 4, %s18
      %p271 = scmp.lt.s32.totalorder %s270, 7
      %s272 = scalar_select %p271, %s270, 7
      %s273 = smul.addr %s272, 8
      %s274 = scalar_lea.vmem %s0, %s273
      %s275 = smul.u32 4, %s18
      %s276 = smul.u32 4, %s18
      %p277 = scmp.lt.s32.totalorder %s276, 7
      %s278 = scalar_select %p277, %s276, 7
      %s279 = smul.addr %s278, 8
      %s280 = scalar_lea.vmem %s7, %s279
      %s281 = smul.u32 4, %s18
      %v283 = vld [vmem:[%s274] sm:$0xff]
      %v284 = vld [vmem:[%s274 + $0x8] sm:$0xff]
      %v285 = vld [vmem:[%s274 + $0x10] sm:$0xff]
      %v286 = vld [vmem:[%s274 + $0x18] sm:$0xff]
      %v287 = vpack.c.bf16 %v284, %v283
      %v288 = vpack.c.bf16 %v286, %v285
      %v289 = vld [vmem:[%s1] sm:$0xf]
      %v290 = vld [vmem:[%s1 + $0x4] sm:$0xf]
      %v291 = vld [vmem:[%s1 + $0x8] sm:$0xf]
      %v292 = vld [vmem:[%s1 + $0xc] sm:$0xf]
      %v293 = vld [vmem:[%s2] sm:$0x1]
      %v295 = vperm.slane %v293, 0
      %v301 = vunpack.c.l.b16 %v289
      %v302 = vunpack.c.l.b16 %v290
      %v303 = vunpack.c.l.b16 %v291
      %v304 = vunpack.c.l.b16 %v292
      %v305 = vpack.c.b16 %v302, %v301
      %v306 = vpack.c.b16 %v304, %v303
      %vm309 = vcmask 261120
      %v311 = vsel %vm309, %v287, 0
      %v314 = vsel %vm309, %v288, 0
      %316 = vmatpush.bf16.msra.mxu0 0
      %317 = vmatpush.bf16.msra.mxu0 0
      %318 = vmatpush.bf16.msra.mxu0 0
      %319 = vmatpush.bf16.msra.mxu0 0
      %320 = vmatpush.bf16.msra.mxu0 0
      %321 = vmatpush.bf16.msra.mxu0 0
      %322 = vmatpush.bf16.msra.mxu0 %v306
      %323 = vmatpush.bf16.msra.mxu0 %v305
      %324 = vmatmul.bf16.gmra.mxu0 %v311
      %v325 = vpop.f32.mrf.mxu0
      %v326 = vadd.f32 %v295, %v325
      %v327 = vpop.f32.mrf.mxu0
      %v328 = vadd.f32 %v295, %v327
      %329 = vmatmul.bf16.gmra.mxu0 %v314
      %v330 = vpop.f32.mrf.mxu0
      %v331 = vadd.f32 %v295, %v330
      %v332 = vpop.f32.mrf.mxu0
      %v333 = vadd.f32 %v295, %v332
      %334 = vdwg.mxu0
      %v335 = vmax.f32 %v326, 0.0
      %v336 = vmax.f32 %v328, 0.0
      %v337 = vmax.f32 %v331, 0.0
      %v338 = vmax.f32 %v333, 0.0
      %v339 = vpack.c.bf16 %v336, %v335
      %v340 = vpack.c.bf16 %v338, %v337
      %v341 = vld [vmem:[%s3] sm:$0xf]
      %v342 = vld [vmem:[%s3 + $0x4] sm:$0xf]
      %v343 = vld [vmem:[%s3 + $0x8] sm:$0xf]
      %v344 = vld [vmem:[%s3 + $0xc] sm:$0xf]
      %v345 = vld [vmem:[%s3 + $0x10] sm:$0xf]
      %v346 = vld [vmem:[%s3 + $0x14] sm:$0xf]
      %v347 = vld [vmem:[%s3 + $0x18] sm:$0x1]
      %v348 = vld [vmem:[%s4] sm:$0x1]
      %v350 = vperm.slane %v348, 0
      %v359 = vunpack.c.l.b16 %v341
      %v360 = vunpack.c.l.b16 %v342
      %v361 = vunpack.c.l.b16 %v343
      %v362 = vunpack.c.l.b16 %v344
      %v363 = vunpack.c.l.b16 %v345
      %v364 = vunpack.c.l.b16 %v346
      %v365 = vunpack.c.l.b16 %v347
      %v366 = vpack.c.b16 %v360, %v359
      %v367 = vpack.c.b16 %v362, %v361
      %v368 = vpack.c.b16 %v364, %v363
      %v369 = vpack.c.b16 %v365, %v365
      %vm373 = vcmask 408576
      %v375 = vsel %vm373, %v339, 0
      %v378 = vsel %vm373, %v340, 0
      %vm380 = vcmask 1040384
      %v382 = vsel %vm380, %v369, 0
      %384 = vmatpush.bf16.msra.mxu0 0
      %385 = vmatpush.bf16.msra.mxu0 0
      %386 = vmatpush.bf16.msra.mxu0 0
      %387 = vmatpush.bf16.msra.mxu0 0
      %388 = vmatpush.bf16.msra.mxu0 %v382
      %389 = vmatpush.bf16.msra.mxu0 %v368
      %390 = vmatpush.bf16.msra.mxu0 %v367
      %391 = vmatpush.bf16.msra.mxu0 %v366
      %392 = vmatmul.bf16.gmra.mxu0 %v375
      %v393 = vpop.f32.mrf.mxu0
      %v394 = vadd.f32 %v350, %v393
      %v395 = vpop.f32.mrf.mxu0
      %v396 = vadd.f32 %v350, %v395
      %397 = vmatmul.bf16.gmra.mxu0 %v378
      %v398 = vpop.f32.mrf.mxu0
      %v399 = vadd.f32 %v350, %v398
      %v400 = vpop.f32.mrf.mxu0
      %v401 = vadd.f32 %v350, %v400
      %402 = vdwg.mxu0
      %v403 = vmax.f32 %v394, 0.0
      %v404 = vmax.f32 %v396, 0.0
      %v405 = vmax.f32 %v399, 0.0
      %v406 = vmax.f32 %v401, 0.0
      %v407 = vpack.c.bf16 %v404, %v403
      %v408 = vpack.c.bf16 %v406, %v405
      %v409 = vld [vmem:[%s5] sm:$0xf]
      %v410 = vld [vmem:[%s5 + $0x4] sm:$0xf]
      %v411 = vld [vmem:[%s5 + $0x8] sm:$0xf]
      %v412 = vld [vmem:[%s5 + $0xc] sm:$0xf]
      %v413 = vld [vmem:[%s5 + $0x10] sm:$0xf]
      %v414 = vld [vmem:[%s5 + $0x14] sm:$0xf]
      %v415 = vld [vmem:[%s5 + $0x18] sm:$0x1]
      %v416 = vld [vmem:[%s6] sm:$0x1]
      %v418 = vperm.slane %v416, 0
      %v427 = vunpack.c.l.b16 %v409
      %v428 = vunpack.c.l.b16 %v410
      %v429 = vunpack.c.l.b16 %v411
      %v430 = vunpack.c.l.b16 %v412
      %v431 = vunpack.c.l.b16 %v413
      %v432 = vunpack.c.l.b16 %v414
      %v433 = vunpack.c.l.b16 %v415
      %v434 = vpack.c.b16 %v428, %v427
      %v435 = vpack.c.b16 %v430, %v429
      %v436 = vpack.c.b16 %v432, %v431
      %v437 = vpack.c.b16 %v433, %v433
      %v442 = vsel %vm373, %v407, 0
      %v445 = vsel %vm373, %v408, 0
      %v448 = vsel %vm380, %v437, 0
      %450 = vmatpush.bf16.msra.mxu0 0
      %451 = vmatpush.bf16.msra.mxu0 0
      %452 = vmatpush.bf16.msra.mxu0 0
      %453 = vmatpush.bf16.msra.mxu0 0
      %454 = vmatpush.bf16.msra.mxu0 %v448
      %455 = vmatpush.bf16.msra.mxu0 %v436
      %456 = vmatpush.bf16.msra.mxu0 %v435
      %457 = vmatpush.bf16.msra.mxu0 %v434
      %458 = vmatmul.bf16.gmra.mxu0 %v442
      %v459 = vpop.f32.mrf.mxu0
      %v460 = vadd.f32 %v418, %v459
      %v461 = vpop.f32.mrf.mxu0
      %v462 = vadd.f32 %v418, %v461
      %463 = vmatmul.bf16.gmra.mxu0 %v445
      %v464 = vpop.f32.mrf.mxu0
      %v465 = vadd.f32 %v418, %v464
      %v466 = vpop.f32.mrf.mxu0
      %v467 = vadd.f32 %v418, %v466
      %468 = vdwg.mxu0
      %469 = vst [vmem:[%s280] sm:$0xff] %v460
      %470 = vst [vmem:[%s280 + $0x8] sm:$0xff] %v462
      %471 = vst [vmem:[%s280 + $0x10] sm:$0xff] %v465
      %472 = vst [vmem:[%s280 + $0x18] sm:$0xff] %v467
      %s473 = smul.u32 4, %s18
      %p474 = scmp.lt.s32.totalorder %s473, 7
      %s475 = scalar_select %p474, %s473, 7
      %s476 = smul.addr %s475, 8
      %s477 = scalar_lea.vmem %s7, %s476
      // Predicated region
      $region49: #{mlp_forward.1} parent=47 // pred_check
        %p478 = pneg %p188
      $region50: #{mlp_forward.1} parent=47 // pred_check_branch
        %480 = sbr.rel (%p478) target = $region52
      $region51: #{mlp_forward.1} parent=47 // pred_region
        %s481 = smul.u32 4, %s18
      $region52: #{mlp_forward.1} parent=47 // pred_fallthru
        _
    $region48: #{mlp_forward.1} parent=5 // pred_fallthru
      _
    %p482 = scmp.le.s32.totalorder 2, %s13
    // Predicated region
    $region53: #{mlp_forward.1} parent=5 // pred_check
      %p483 = pneg %p482
    $region54: #{mlp_forward.1} parent=5 // pred_check_branch
      %485 = sbr.rel (%p483) target = $region56
    $region55: #{mlp_forward.1} parent=5 // pred_region
      %s486 = ssub.s32 %s13, 2
      // Predicated region
      $region57: #{mlp_forward.1} parent=55 // pred_check
        %p487 = pneg %p194
      $region58: #{mlp_forward.1} parent=55 // pred_check_branch
        %489 = sbr.rel (%p487) target = $region60
      $region59: #{mlp_forward.1} parent=55 // pred_region
        %s490 = smul.u32 4, %s19
        %p491 = scmp.lt.s32.totalorder %s490, 7
        %s492 = scalar_select %p491, %s490, 7
        %s493 = smul.addr %s492, 8
        %s494 = scalar_lea.vmem %s7, %s493
      $region60: #{mlp_forward.1} parent=55 // pred_fallthru
        _
    $region56: #{mlp_forward.1} parent=5 // pred_fallthru
      _
  $region6: #{mlp_forward.1} parent=0 // loop_footer
    %s17 = sadd.s32 1, %s13
  $region7: #{mlp_forward.1} parent=0 // loop_footer_branch
    %12 = sbr.rel target = $region3
  $region8: #{mlp_forward.1} parent=0 // loop_exit
    _

</llo_original>
